<compile_context>
chip_gen: v6e
topology: v6e:2x2x1
jax: 0.10.0
libtpu: 0.0.40
codegen_flags: <defaults>
</compile_context>

<pallas_src>
import functools

import jax
import jax.numpy as jnp
from jax.experimental import pallas as pl
from jax.experimental.pallas import tpu as pltpu

LANES = 128
SUBLANES = 8
MAX_TILE_ROWS = 2048     # 2048 x 128 f32 = 1 MiB per input block
NUM_SPLITS = 2           # leading "parallel" axis -> both TensorCores on v7x
EPS = 1e-07
# With label 0 and pred 2^-23:  f32(1 + 1e-7) - 2^-23 == 1.0 exactly, so a padded
# element's loss is log(1.0) == 0 and padding needs no masking at all.
PAD_PRED = 2.0 ** -23


def _cdiv(a, b):
    return -(-a // b)


def _wbce_kernel(preds_ref, labels_ref, out_ref, *, weight_positive):
    i = pl.program_id(1)            # inner, sequential ("arbitrary") axis

    p = preds_ref[...].astype(jnp.float32)
    y = labels_ref[...].astype(jnp.float32)

    # loss = -(w*y*log(p+eps) + (1-y)*log(1-p+eps)) == -t  with
    #   a = log(p+eps), b = log((1+eps)-p), t = y*(w*a - b) + b
    a = jnp.log(p + EPS)
    b = jnp.log((1.0 + EPS) - p)
    t = y * (weight_positive * a - b) + b

    # Reduce the (tile_rows, 128) tile to an (8, 128) partial using elementwise adds
    # only; the single cross-lane/sublane reduction happens once, in the wrapper.
    partial = t.reshape(-1, SUBLANES, LANES).sum(axis=0)

    # The output block index depends only on the "parallel" axis, so out_ref stays
    # resident across the inner axis and doubles as the accumulator (no zero-init pass).
    @pl.when(i == 0)
    def _init():
        out_ref[...] = partial

    @pl.when(i > 0)
    def _accum():
        out_ref[...] += partial


def weighted_bce_pallas(y_true, y_pred, weight_positive):
    """Scalar mean weighted BCE, matching the PyTorch module's forward."""
    n = y_pred.size
    assert y_true.size == n, "y_true / y_pred must have the same number of elements"
    assert n > 0

    p_flat = jnp.ravel(y_pred)
    y_flat = jnp.ravel(y_true)

    # Grid / tile geometry: a lane-dense (rows, 128) slab, split into NUM_SPLITS
    # contiguous halves (one per TensorCore on v7x), each streamed in tile_rows blocks.
    rows_min = _cdiv(n, SUBLANES * LANES) * SUBLANES
    tile_rows = min(MAX_TILE_ROWS, SUBLANES * _cdiv(rows_min, NUM_SPLITS * SUBLANES))
    tiles_per_split = _cdiv(rows_min, NUM_SPLITS * tile_rows)
    # Second pass: shrink tile_rows to minimise structural padding (still a multiple of 8).
    tile_rows = SUBLANES * _cdiv(rows_min, NUM_SPLITS * tiles_per_split * SUBLANES)
    padded_rows = NUM_SPLITS * tiles_per_split * tile_rows
    pad = padded_rows * LANES - n

    if pad:
        # Neutral padding: per-element loss of (pred=2^-23, label=0) is exactly 0 in the
        # kernel's op order, so no in-kernel mask is required.
        # TODO(synk): for large 1024-aligned inputs that don't factor into the grid, a
        # last-tile-only mask would avoid this wrapper-side pad copy.
        p_flat = jnp.pad(p_flat, (0, pad), constant_values=PAD_PRED)
        y_flat = jnp.pad(y_flat, (0, pad), constant_values=0)

    p2d = p_flat.reshape(padded_rows, LANES)
    y2d = y_flat.reshape(padded_rows, LANES)

    def in_map(s, i):
        return (s * tiles_per_split + i, 0)

    kernel = functools.partial(_wbce_kernel, weight_positive=float(weight_positive))

    partials = pl.pallas_call(
        kernel,
        out_shape=jax.ShapeDtypeStruct((NUM_SPLITS * SUBLANES, LANES), jnp.float32),
        grid_spec=pltpu.PrefetchScalarGridSpec(
            num_scalar_prefetch=0,
            grid=(NUM_SPLITS, tiles_per_split),
            in_specs=[
                pl.BlockSpec((tile_rows, LANES), in_map),
                pl.BlockSpec((tile_rows, LANES), in_map),
            ],
            out_specs=pl.BlockSpec((SUBLANES, LANES), lambda s, i: (s, 0)),
        ),
        compiler_params=pltpu.CompilerParams(
            dimension_semantics=("parallel", "arbitrary"),
        ),
    )(p2d, y2d)

    # loss = -t; fold the negation and the mean into the wrapper.
    return (-jnp.sum(partials) / n).astype(jnp.float32)


def weighted_bce_ref(y_true, y_pred, weight_positive):
    """Pure-JAX reference mirroring the PyTorch forward."""
    y = y_true.astype(jnp.float32)
    p = y_pred.astype(jnp.float32)
    loss = -(weight_positive * y * jnp.log(p + 1e-07)
             + (1.0 - y) * jnp.log(1.0 - p + 1e-07))
    return jnp.mean(loss)


if __name__ == "__main__":
    key = jax.random.PRNGKey(0)
    k1, k2 = jax.random.split(key)

    # Small NCHW example: predictions are sigmoid outputs in (0, 1), labels are {0, 1}.
    B, C, H, W = 2, 4, 16, 16
    y_pred = jax.nn.sigmoid(jax.random.normal(k1, (B, C, H, W), dtype=jnp.float32))
    y_true = (jax.random.uniform(k2, (B, C, H, W)) > 0.5).astype(jnp.float32)
    w_pos = 0.7

    out = weighted_bce_pallas(y_true, y_pred, weight_positive=w_pos)
    out = jax.block_until_ready(out)

    ref = weighted_bce_ref(y_true, y_pred, w_pos)
    assert jnp.allclose(out, ref, rtol=1e-5, atol=1e-6), (out, ref)

    # Unaligned element count -> exercises the neutral-padding path (no in-kernel mask).
    B2, C2, H2, W2 = 2, 3, 7, 5
    y_pred2 = jax.nn.sigmoid(jax.random.normal(k1, (B2, C2, H2, W2), dtype=jnp.float32))
    y_true2 = (jax.random.uniform(k2, (B2, C2, H2, W2)) > 0.5).astype(jnp.float32)
    out2 = jax.block_until_ready(weighted_bce_pallas(y_true2, y_pred2, w_pos))
    ref2 = weighted_bce_ref(y_true2, y_pred2, w_pos)
    assert jnp.allclose(out2, ref2, rtol=1e-5, atol=1e-6), (out2, ref2)

    print("KERNEL_OK")
</pallas_src>

<mosaic_0001>
module attributes {stable_mosaic.version = 11 : i64} {
  func.func @_wbce_kernel(%arg0: i32, %arg1: i32, %arg2: memref<8x128xf32, #tpu.memory_space<vmem>>, %arg3: memref<8x128xf32, #tpu.memory_space<vmem>>, %arg4: memref<8x128xf32, #tpu.memory_space<vmem>>) attributes {dimension_semantics = [#tpu.dimension_semantics<parallel>, #tpu.dimension_semantics<arbitrary>], iteration_bounds = array<i64: 2, 1>, scalar_prefetch = 0 : i64, scratch_operands = 0 : i64, tpu.core_type = #tpu.core_type<tc>, window_params = [{transform_indices = @transform_0, window_bounds = array<i64: 8, 128>}, {transform_indices = @transform_1, window_bounds = array<i64: 8, 128>}, {transform_indices = @transform_2, window_bounds = array<i64: 8, 128>}]} {
    %c0 = arith.constant 0 : index
    %c0_0 = arith.constant 0 : index
    %0 = vector.load %arg2[%c0, %c0_0] : memref<8x128xf32, #tpu.memory_space<vmem>>, vector<8x128xf32>
    %c0_1 = arith.constant 0 : index
    %c0_2 = arith.constant 0 : index
    %1 = vector.load %arg3[%c0_1, %c0_2] : memref<8x128xf32, #tpu.memory_space<vmem>>, vector<8x128xf32>
    %cst = arith.constant 1.000000e-07 : f32
    %2 = vector.broadcast %cst : f32 to vector<8x128xf32>
    %3 = arith.addf %0, %2 : vector<8x128xf32>
    %4 = math.log %3 : vector<8x128xf32>
    %cst_3 = arith.constant 1.00000012 : f32
    %5 = vector.broadcast %cst_3 : f32 to vector<8x128xf32>
    %6 = arith.subf %5, %0 : vector<8x128xf32>
    %7 = math.log %6 : vector<8x128xf32>
    %cst_4 = arith.constant 0.699999988 : f32
    %8 = vector.broadcast %cst_4 : f32 to vector<8x128xf32>
    %9 = arith.mulf %8, %4 : vector<8x128xf32>
    %10 = arith.subf %9, %7 : vector<8x128xf32>
    %11 = arith.mulf %1, %10 : vector<8x128xf32>
    %12 = arith.addf %11, %7 : vector<8x128xf32>
    %13 = vector.shape_cast %12 : vector<8x128xf32> to vector<1x8x128xf32>
    %cst_5 = arith.constant dense<0.000000e+00> : vector<8x128xf32>
    %14 = vector.multi_reduction <add>, %13, %cst_5 [0] : vector<1x8x128xf32> to vector<8x128xf32>
    %c0_i32 = arith.constant 0 : i32
    %15 = arith.cmpi eq, %arg1, %c0_i32 : i32
    %16 = arith.extui %15 : i1 to i32
    %c0_i32_6 = arith.constant 0 : i32
    %17 = arith.cmpi ne, %16, %c0_i32_6 : i32
    scf.if %17 {
      %c0_9 = arith.constant 0 : index
      %c0_10 = arith.constant 0 : index
      %21 = vector.load %arg4[%c0_9, %c0_10] : memref<8x128xf32, #tpu.memory_space<vmem>>, vector<8x128xf32>
      tpu.vector_store %arg4[%c0_9, %c0_10], %14 {strides = array<i32>} : memref<8x128xf32, #tpu.memory_space<vmem>>, vector<8x128xf32>,
    } else {
    }
    %c0_i32_7 = arith.constant 0 : i32
    %18 = arith.cmpi sgt, %arg1, %c0_i32_7 : i32
    %19 = arith.extui %18 : i1 to i32
    %c0_i32_8 = arith.constant 0 : i32
    %20 = arith.cmpi ne, %19, %c0_i32_8 : i32
    scf.if %20 {
      %c0_9 = arith.constant 0 : index
      %c0_10 = arith.constant 0 : index
      %21 = vector.load %arg4[%c0_9, %c0_10] : memref<8x128xf32, #tpu.memory_space<vmem>>, vector<8x128xf32>
      %22 = arith.addf %21, %14 : vector<8x128xf32>
      %c0_11 = arith.constant 0 : index
      %c0_12 = arith.constant 0 : index
      %23 = vector.load %arg4[%c0_11, %c0_12] : memref<8x128xf32, #tpu.memory_space<vmem>>, vector<8x128xf32>
      tpu.vector_store %arg4[%c0_11, %c0_12], %22 {strides = array<i32>} : memref<8x128xf32, #tpu.memory_space<vmem>>, vector<8x128xf32>,
    } else {
    }
    return
  }
  func.func @transform_0(%arg0: i32, %arg1: i32) -> (i32, i32) {
    %c1_i32 = arith.constant 1 : i32
    %0 = arith.muli %arg0, %c1_i32 : i32
    %1 = arith.addi %0, %arg1 : i32
    %c0_i32 = arith.constant 0 : i32
    %c0_i32_0 = arith.constant 0 : i32
    return %1, %c0_i32 : i32, i32
  }
  func.func @transform_1(%arg0: i32, %arg1: i32) -> (i32, i32) {
    %c1_i32 = arith.constant 1 : i32
    %0 = arith.muli %arg0, %c1_i32 : i32
    %1 = arith.addi %0, %arg1 : i32
    %c0_i32 = arith.constant 0 : i32
    %c0_i32_0 = arith.constant 0 : i32
    return %1, %c0_i32 : i32, i32
  }
  func.func @transform_2(%arg0: i32, %arg1: i32) -> (i32, i32) {
    %c0_i32 = arith.constant 0 : i32
    %c0_i32_0 = arith.constant 0 : i32
    return %arg0, %c0_i32 : i32, i32
  }
}

</mosaic_0001>

<llo_original>
// kernel: tpu_custom_call.1
$region0: #{tpu_custom_call.1}
  #allocation0 [shape = 'u32[]', space=smem, size = 0x4, offset = 0x4, fixed_abs, tag = 'smem constant byte address 0x4 - core index']
  #allocation1 [shape = 'u32[144,128]{1,0:T(1,128)}', space=vmem, size = 0x12000, scoped, tag = 'internal scratch']
  %s0 = inlined_call_operand.hbm [shape: f32[16,128], index: 0, kind: input, shape index: {}]
  %s1 = inlined_call_operand.hbm [shape: f32[16,128], index: 1, kind: input, shape index: {}]
  %s2 = inlined_call_operand.hbm [shape: f32[16,128], index: 2, kind: output, shape index: {}]
  %s3 = sld [smem:[#allocation0]]
  $region57: #{tpu_custom_call.1} parent=0
    _
  %s5 = ssub.s32 1, %s3
  %s6 = scalar_select 0, %s5, %s3
  $region1: #{tpu_custom_call.1} parent=0
    #allocation2 [shape = 'u8[8192]{0}', space=vmem, size = 0x2000, scoped, tag = 'input window, operand 0']
    #allocation3 [shape = 's32[2]{0}', space=sflag, size = 0x8, scoped, tag = 'scoped memory for tpu_custom_call.1']
    #allocation4 [shape = 's32[2]{0}', space=sflag, size = 0x8, scoped, tag = 'scoped memory for tpu_custom_call.1']
    #allocation5 [shape = 'u8[8192]{0}', space=vmem, size = 0x2000, scoped, tag = 'input window, operand 1']
    #allocation6 [shape = 's32[2]{0}', space=sflag, size = 0x8, scoped, tag = 'scoped memory for tpu_custom_call.1']
    #allocation7 [shape = 'u8[8192]{0}', space=vmem, size = 0x2000, scoped, tag = 'output window, operand 0']
    %7 = vsyncpa [#allocation3], 0
    %s8 = scalar_lea.sflag [#allocation3], 1
    %9 = vsyncpa %s8, 0
    %10 = vsyncpa [#allocation6], 0
    %s11 = scalar_lea.sflag [#allocation6], 1
    %12 = vsyncpa %s11, 0
    %13 = vsyncpa [#allocation4], 0
    %s14 = scalar_lea.sflag [#allocation4], 1
    %15 = vsyncpa %s14, 0
    loop: start=0, step=1, limit=4
    $region2: #{tpu_custom_call.1} parent=1 // loop_pre_header
      _
    $region3: #{tpu_custom_call.1} parent=1 // loop_header
      %s17 = sphi 0, %s21
      %p18 = scmp.ge.s32.totalorder %s17, 4
      %s24 = sphi 0, %s36
      %s25 = sphi 0, %s32
      %s26 = sphi 0, %s24
      %s27 = sphi 0, %s25
      %s28 = sphi 0, %s26
      %s29 = sphi 0, %s27
      %s41 = sphi 0, %s43
      %s44 = sphi 0, %s41
      %s45 = sphi 0, %s44
      %s61 = sphi 0, %s45
      %s69 = sphi 0, %s71
      %s72 = sphi 0, %s69
      %s73 = sphi 0, %s72
      %s89 = sphi 0, %s73
      %s95 = sphi 0, %s97
      %s98 = sphi 0, %s95
      %s99 = sphi 0, %s98
      %s115 = sphi 0, %s99
    $region4: #{tpu_custom_call.1} parent=1 // loop_header_branch
      %20 = sbr.rel (%p18) target = $region8
    $region5: #{tpu_custom_call.1} parent=1 // loop_body
      %s22 = ssub.s32 %s17, 1
      %s23 = ssub.s32 %s17, 2
      %s30 = sadd.s32 1, %s25
      %p31 = scmp.ge.s32.totalorder %s30, 1
      %s32 = scalar_select %p31, 0, %s30
      %s33 = sadd.s32 1, %s24
      %s34 = scalar_select %p31, %s33, %s24
      %p35 = scmp.ge.s32.totalorder %s34, 2
      %s36 = scalar_select %p35, 0, %s34
      %s37 = sadd.s32 %s24, %s25
      %s38 = sadd.s32 %s36, %s32
      %s39 = ssub.s32 %s37, %s38
      %p40 = scmp.eq.s32.totalorder %s39, 0
      %s42 = sadd.s32 %s41, 1
      %s43 = scalar_select %p40, %s41, %s42
      %p46 = pneg %p40
      %p47 = scmp.eq.s32.totalorder %s17, 1
      %p48 = por %p46, %p47
      %p49 = scmp.ne.s32.totalorder %s41, %s44
      %p50 = scmp.eq.s32.totalorder %s17, 0
      %p51 = por %p49, %p50
      %p52 = scmp.ne.s32.totalorder %s41, %s44
      %p53 = scmp.eq.s32.totalorder %s22, 1
      %p54 = por %p52, %p53
      %p55 = scmp.ne.s32.totalorder %s44, %s45
      %p56 = scmp.eq.s32.totalorder %s22, 0
      %p57 = por %p55, %p56
      %p58 = scmp.ne.s32.totalorder %s44, %s45
      %p59 = scmp.eq.s32.totalorder %s23, 1
      %p60 = por %p58, %p59
      %p62 = scmp.ne.s32.totalorder %s45, %s61
      %p63 = scmp.eq.s32.totalorder %s23, 0
      %p64 = por %p62, %p63
      %s65 = sadd.s32 %s24, %s25
      %s66 = sadd.s32 %s36, %s32
      %s67 = ssub.s32 %s65, %s66
      %p68 = scmp.eq.s32.totalorder %s67, 0
      %s70 = sadd.s32 %s69, 1
      %s71 = scalar_select %p68, %s69, %s70
      %p74 = pneg %p68
      %p75 = scmp.eq.s32.totalorder %s17, 1
      %p76 = por %p74, %p75
      %p77 = scmp.ne.s32.totalorder %s69, %s72
      %p78 = scmp.eq.s32.totalorder %s17, 0
      %p79 = por %p77, %p78
      %p80 = scmp.ne.s32.totalorder %s69, %s72
      %p81 = scmp.eq.s32.totalorder %s22, 1
      %p82 = por %p80, %p81
      %p83 = scmp.ne.s32.totalorder %s72, %s73
      %p84 = scmp.eq.s32.totalorder %s22, 0
      %p85 = por %p83, %p84
      %p86 = scmp.ne.s32.totalorder %s72, %s73
      %p87 = scmp.eq.s32.totalorder %s23, 1
      %p88 = por %p86, %p87
      %p90 = scmp.ne.s32.totalorder %s73, %s89
      %p91 = scmp.eq.s32.totalorder %s23, 0
      %p92 = por %p90, %p91
      %s93 = ssub.s32 %s24, %s36
      %p94 = scmp.eq.s32.totalorder %s93, 0
      %s96 = sadd.s32 %s95, 1
      %s97 = scalar_select %p94, %s95, %s96
      %p100 = pneg %p94
      %p101 = scmp.eq.s32.totalorder %s17, 1
      %p102 = por %p100, %p101
      %p103 = scmp.ne.s32.totalorder %s95, %s98
      %p104 = scmp.eq.s32.totalorder %s17, 0
      %p105 = por %p103, %p104
      %p106 = scmp.ne.s32.totalorder %s95, %s98
      %p107 = scmp.eq.s32.totalorder %s22, 1
      %p108 = por %p106, %p107
      %p109 = scmp.ne.s32.totalorder %s98, %s99
      %p110 = scmp.eq.s32.totalorder %s22, 0
      %p111 = por %p109, %p110
      %p112 = scmp.ne.s32.totalorder %s98, %s99
      %p113 = scmp.eq.s32.totalorder %s23, 1
      %p114 = por %p112, %p113
      %p116 = scmp.ne.s32.totalorder %s99, %s115
      %p117 = scmp.eq.s32.totalorder %s23, 0
      %p118 = por %p116, %p117
      %p119 = scmp.le.s32.totalorder 1, %s17
      %p120 = scmp.lt.s32.totalorder %s17, 3
      %p121 = pnand %p119, %p120
      %p122 = pneg %p121
      // Predicated region
      $region9: #{tpu_custom_call.1} parent=5 // pred_check
        _
      $region10: #{tpu_custom_call.1} parent=5 // pred_check_branch
        %124 = sbr.rel (%p121) target = $region12
      $region11: #{tpu_custom_call.1} parent=5 // pred_region
        %s125 = ssub.s32 %s17, 1
      $region12: #{tpu_custom_call.1} parent=5 // pred_fallthru
        _
      %p126 = scmp.lt.s32.totalorder %s17, 2
      // Predicated region
      $region13: #{tpu_custom_call.1} parent=5 // pred_check
        %p127 = pneg %p126
      $region14: #{tpu_custom_call.1} parent=5 // pred_check_branch
        %129 = sbr.rel (%p127) target = $region16
      $region15: #{tpu_custom_call.1} parent=5 // pred_region
        // Predicated region
        $region17: #{tpu_custom_call.1} parent=15 // pred_check
          %p130 = pneg %p51
        $region18: #{tpu_custom_call.1} parent=15 // pred_check_branch
          %132 = sbr.rel (%p130) target = $region20
        $region19: #{tpu_custom_call.1} parent=15 // pred_region
          %s133 = sand.u32 %s41, 1
          %s134 = scalar_lea.sflag [#allocation3], %s133
          %s135 = sand.u32 %s41, 1
          %s136 = smul.addr %s135, 8
          %s137 = scalar_lea.vmem [#allocation2], %s136
          %s138 = sadd.s32 %s24, %s25
          %s140 = ssub.s32 128, 128
          %141 = vsyncadd %s134, %s140
          %s142 = smul.addr %s138, 128
          %s143 = scalar_lea.hbm %s0, %s142
          %s145 = sshll.u32 %s137, 4
          %s146 = int_to_ptr.vmem [resolvable:$true] %s145
          %148 = dma.hbm_to_vmem [thread:$0]  %s143, 128, %s146, %s134
        $region20: #{tpu_custom_call.1} parent=15 // pred_fallthru
          _
        // Predicated region
        $region21: #{tpu_custom_call.1} parent=15 // pred_check
          %p149 = pneg %p79
        $region22: #{tpu_custom_call.1} parent=15 // pred_check_branch
          %151 = sbr.rel (%p149) target = $region24
        $region23: #{tpu_custom_call.1} parent=15 // pred_region
          %s152 = sand.u32 %s69, 1
          %s153 = scalar_lea.sflag [#allocation6], %s152
          %s154 = sand.u32 %s69, 1
          %s155 = smul.addr %s154, 8
          %s156 = scalar_lea.vmem [#allocation5], %s155
          %s157 = sadd.s32 %s24, %s25
          %s159 = ssub.s32 128, 128
          %160 = vsyncadd %s153, %s159
          %s161 = smul.addr %s157, 128
          %s162 = scalar_lea.hbm %s1, %s161
          %s164 = sshll.u32 %s156, 4
          %s165 = int_to_ptr.vmem [resolvable:$true] %s164
          %167 = dma.hbm_to_vmem [thread:$0]  %s162, 128, %s165, %s153
        $region24: #{tpu_custom_call.1} parent=15 // pred_fallthru
          _
      $region16: #{tpu_custom_call.1} parent=5 // pred_fallthru
        _
      %p168 = scmp.le.s32.totalorder 1, %s17
      %p169 = scmp.lt.s32.totalorder %s17, 3
      %p170 = pnand %p168, %p169
      %p171 = pneg %p170
      // Predicated region
      $region25: #{tpu_custom_call.1} parent=5 // pred_check
        _
      $region26: #{tpu_custom_call.1} parent=5 // pred_check_branch
        %173 = sbr.rel (%p170) target = $region28
      $region27: #{tpu_custom_call.1} parent=5 // pred_region
        %s174 = ssub.s32 %s17, 1
        %s175 = sand.u32 %s44, 1
        %s176 = scalar_lea.sflag [#allocation3], %s175
        %s177 = sand.u32 %s44, 1
        %s178 = smul.addr %s177, 8
        %s179 = scalar_lea.vmem [#allocation2], %s178
        // Predicated region
        $region29: #{tpu_custom_call.1} parent=27 // pred_check
          %p180 = pneg %p57
        $region30: #{tpu_custom_call.1} parent=27 // pred_check_branch
          %182 = sbr.rel (%p180) target = $region32
        $region31: #{tpu_custom_call.1} parent=27 // pred_region
          %183 = dma.done %s176, 128
        $region32: #{tpu_custom_call.1} parent=27 // pred_fallthru
          _
        %s184 = sand.u32 %s72, 1
        %s185 = scalar_lea.sflag [#allocation6], %s184
        %s186 = sand.u32 %s72, 1
        %s187 = smul.addr %s186, 8
        %s188 = scalar_lea.vmem [#allocation5], %s187
        // Predicated region
        $region33: #{tpu_custom_call.1} parent=27 // pred_check
          %p189 = pneg %p85
        $region34: #{tpu_custom_call.1} parent=27 // pred_check_branch
          %191 = sbr.rel (%p189) target = $region36
        $region35: #{tpu_custom_call.1} parent=27 // pred_region
          %192 = dma.done %s185, 128
        $region36: #{tpu_custom_call.1} parent=27 // pred_fallthru
          _
        %s193 = sand.u32 %s44, 1
        %s194 = scalar_lea.sflag [#allocation3], %s193
        %s195 = sand.u32 %s44, 1
        %s196 = smul.addr %s195, 8
        %s197 = scalar_lea.vmem [#allocation2], %s196
        %p198 = pneg %p57
        %p199 = pneg %p54
        %s200 = sand.u32 %s72, 1
        %s201 = scalar_lea.sflag [#allocation6], %s200
        %s202 = sand.u32 %s72, 1
        %s203 = smul.addr %s202, 8
        %s204 = scalar_lea.vmem [#allocation5], %s203
        %p205 = pneg %p85
        %p206 = pneg %p82
        %p207 = pneg %p111
        %p208 = pneg %p108
        %s209 = sand.u32 %s98, 1
        %s210 = scalar_lea.sflag [#allocation4], %s209
        %s211 = sand.u32 %s98, 1
        %s212 = smul.addr %s211, 8
        %s213 = scalar_lea.vmem [#allocation7], %s212
        %s214 = sadd.s32 %s26, %s27
        %s215 = sadd.s32 %s26, %s27
        %v216 = vld [vmem:[%s179] sm:$0xff]
        %v217 = vld [vmem:[%s188] sm:$0xff]
        %v218 = vadd.f32 %v216, 1e-07
        %v219 = vlog2.pop %v218
        %v220 = vmul.f32 %v219, 0.6931472
        %v221 = vsub.f32 1.0000001, %v216
        %v222 = vlog2.pop %v221
        %v223 = vmul.f32 %v222, 0.6931472
        %v224 = vmul.f32 %v220, 0.7
        %v225 = vsub.f32 %v224, %v223
        %v226 = vmul.f32 %v217, %v225
        %v227 = vadd.f32 %v226, %v223
        %v228 = vadd.f32 %v227, 0.0
        %p229 = scmp.eq.s32.totalorder %s27, 0
        // Predicated region
        $region37: #{tpu_custom_call.1} parent=27 // pred_check
          %p230 = pneg %p229
        $region38: #{tpu_custom_call.1} parent=27 // pred_check_branch
          %232 = sbr.rel (%p230) target = $region40
        $region39: #{tpu_custom_call.1} parent=27 // pred_region
          %233 = vst [vmem:[%s213] sm:$0xff] %v228
        $region40: #{tpu_custom_call.1} parent=27 // pred_fallthru
          _
        %p234 = scmp.gt.s32.totalorder %s27, 0
        // Predicated region
        $region41: #{tpu_custom_call.1} parent=27 // pred_check
          %p235 = pneg %p234
        $region42: #{tpu_custom_call.1} parent=27 // pred_check_branch
          %237 = sbr.rel (%p235) target = $region44
        $region43: #{tpu_custom_call.1} parent=27 // pred_region
          %v238 = vld [vmem:[%s213] sm:$0xff]
          %v239 = vadd.f32 %v238, %v228
          %240 = vst [vmem:[%s213] sm:$0xff] %v239
        $region44: #{tpu_custom_call.1} parent=27 // pred_fallthru
          _
        %s241 = sand.u32 %s98, 1
        %s242 = scalar_lea.sflag [#allocation4], %s241
        %s243 = sand.u32 %s98, 1
        %s244 = smul.addr %s243, 8
        %s245 = scalar_lea.vmem [#allocation7], %s244
        // Predicated region
        $region45: #{tpu_custom_call.1} parent=27 // pred_check
          %p246 = pneg %p108
        $region46: #{tpu_custom_call.1} parent=27 // pred_check_branch
          %248 = sbr.rel (%p246) target = $region48
        $region47: #{tpu_custom_call.1} parent=27 // pred_region
          %s250 = ssub.s32 128, 128
          %251 = vsyncadd %s242, %s250
          %s252 = smul.addr %s26, 128
          %s253 = scalar_lea.hbm %s2, %s252
          %s255 = sshll.u32 %s245, 4
          %s256 = int_to_ptr.vmem [resolvable:$true] %s255
          %258 = dma.vmem_to_hbm [thread:$0]  %s256, 128, %s253, %s242
        $region48: #{tpu_custom_call.1} parent=27 // pred_fallthru
          _
      $region28: #{tpu_custom_call.1} parent=5 // pred_fallthru
        _
      %p259 = scmp.le.s32.totalorder 2, %s17
      // Predicated region
      $region49: #{tpu_custom_call.1} parent=5 // pred_check
        %p260 = pneg %p259
      $region50: #{tpu_custom_call.1} parent=5 // pred_check_branch
        %262 = sbr.rel (%p260) target = $region52
      $region51: #{tpu_custom_call.1} parent=5 // pred_region
        %s263 = ssub.s32 %s17, 2
        // Predicated region
        $region53: #{tpu_custom_call.1} parent=51 // pred_check
          %p264 = pneg %p114
        $region54: #{tpu_custom_call.1} parent=51 // pred_check_branch
          %266 = sbr.rel (%p264) target = $region56
        $region55: #{tpu_custom_call.1} parent=51 // pred_region
          %s267 = sand.u32 %s99, 1
          %s268 = scalar_lea.sflag [#allocation4], %s267
          %s269 = sand.u32 %s99, 1
          %s270 = smul.addr %s269, 8
          %s271 = scalar_lea.vmem [#allocation7], %s270
          %272 = dma.done %s268, 128
        $region56: #{tpu_custom_call.1} parent=51 // pred_fallthru
          _
      $region52: #{tpu_custom_call.1} parent=5 // pred_fallthru
        _
    $region6: #{tpu_custom_call.1} parent=1 // loop_footer
      %s21 = sadd.s32 1, %s17
    $region7: #{tpu_custom_call.1} parent=1 // loop_footer_branch
      %16 = sbr.rel target = $region3
    $region8: #{tpu_custom_call.1} parent=1 // loop_exit
      _
    %273 = vsyncpa [#allocation3], 1
    %s274 = scalar_lea.sflag [#allocation3], 1
    %275 = vsyncpa %s274, 1
    %276 = vsyncpa [#allocation6], 1
    %s277 = scalar_lea.sflag [#allocation6], 1
    %278 = vsyncpa %s277, 1
    %279 = vsyncpa [#allocation4], 1
    %s280 = scalar_lea.sflag [#allocation4], 1
    %281 = vsyncpa %s280, 1

</llo_original>
